<compile_context>
chip_gen: v5e
topology: v5e:2x2
jax: 0.10.0
libtpu: 0.0.40
codegen_flags: <defaults>
</compile_context>

<pallas_src>
import jax
import jax.numpy as jnp
from jax import lax
from jax.experimental import pallas as pl
from jax.experimental.pallas import tpu as pltpu

_SUBLANES = 8
_LANES = 128


def _tv_partial_kernel(img_ref, mask_ref, out_ref):
    """Per-batch partial sums of the two TV terms.

    Output block (1, 8, 128): sublane row 0 = sum |horizontal diffs|,
    sublane row 1 = sum |vertical diffs| (broadcast across lanes).
    """
    C = img_ref.shape[1]
    Cm = mask_ref.shape[1]
    H = img_ref.shape[2]
    W = img_ref.shape[3]

    # conv2d(1 - mask) with an all-ones 3x3 weight (padding=1, no bias) gives
    # the same plane for every output channel: the zero-padded 3x3 box-sum of
    # the channel-sum of (1 - mask) == Cm - sum_c(mask).  Kept in f32.
    msum = jnp.sum(mask_ref[0].astype(jnp.float32), axis=0)          # (H, W)
    s = jnp.float32(Cm) - msum

    row = lax.broadcasted_iota(jnp.int32, (H, W), 0)
    col = lax.broadcasted_iota(jnp.int32, (H, W), 1)

    # Separable zero-padded 3x3 box-sum: 3-tap horizontal, then 3-tap vertical.
    left = jnp.where(col >= 1, pltpu.roll(s, shift=1, axis=1), 0.0)
    right = jnp.where(col < W - 1, pltpu.roll(s, shift=W - 1, axis=1), 0.0)
    hsum = s + left + right
    up = jnp.where(row >= 1, pltpu.roll(hsum, shift=1, axis=0), 0.0)
    down = jnp.where(row < H - 1, pltpu.roll(hsum, shift=H - 1, axis=0), 0.0)
    box = hsum + up + down

    holes = box != 0.0                                               # bool

    # Per-channel |P - shift(P)| accumulated UNMASKED into f32 planes; the
    # wraparound column/row is removed once, after the channel loop (hoisted
    # edge-mask selects).  The diff math stays in the image's native dtype.
    zero_img = jnp.zeros((), img_ref.dtype)
    da_acc = jnp.zeros((H, W), jnp.float32)
    db_acc = jnp.zeros((H, W), jnp.float32)
    for c in range(C):                                  # static unroll over C
        pc = jnp.where(holes, img_ref[0, c], zero_img)        # native dtype
        da_acc += jnp.abs(pc - pltpu.roll(pc, shift=1, axis=1)).astype(
            jnp.float32)
        db_acc += jnp.abs(pc - pltpu.roll(pc, shift=1, axis=0)).astype(
            jnp.float32)

    sum_a = jnp.sum(jnp.where(col >= 1, da_acc, 0.0))
    sum_b = jnp.sum(jnp.where(row >= 1, db_acc, 0.0))

    ridx = lax.broadcasted_iota(jnp.int32, (_SUBLANES, _LANES), 0)
    tile = jnp.where(ridx == 0, sum_a, jnp.where(ridx == 1, sum_b, 0.0))
    out_ref[...] = tile[None]


def _vmem_limit_bytes(block_bytes, H, W):
    # double-buffered input blocks + ~8 in-kernel f32 (H, W) planes + headroom
    need = 2 * block_bytes + 8 * H * W * 4 + (2 << 20)
    try:
        cap = int(pltpu.get_tpu_info().vmem_capacity_bytes)
    except Exception:  # conservative fallback if the query is unavailable
        cap = 64 << 20
    ceiling = (cap * 4) // 5          # leave room for internal scratch
    return int(min(max(need, 16 << 20), ceiling))


def total_variation_loss(image, mask):
    """Pallas implementation of PerceptualLossBase._total_variation_loss.

    `image`: (N, C, H, W), any float dtype (diff math runs in that dtype).
    `mask`:  (N, Cm, H, W) with Cm == C or Cm == 1 (channel-collapsed hole
    mask — exactly equivalent for the all-ones dilation conv and cheaper on
    HBM).  The mask is cast to f32 inside VMEM, so any loadable dtype works.
    """
    N, C, H, W = image.shape
    Nm, Cm, Hm, Wm = mask.shape
    assert (Nm, Hm, Wm) == (N, H, W), "image/mask batch or spatial mismatch"
    assert Cm in (1, C), "mask channels must be 1 or equal to image channels"
    if H < 2 or W < 2:
        # The reference torch.mean over an empty slice would be NaN; make the
        # degenerate case explicit instead of silently dividing by zero.
        raise ValueError("total_variation_loss requires H >= 2 and W >= 2")

    count_a = float(N * C * H * (W - 1))
    count_b = float(N * C * (H - 1) * W)

    block_bytes = (C * H * W * image.dtype.itemsize
                   + Cm * H * W * mask.dtype.itemsize)
    vmem_limit = _vmem_limit_bytes(block_bytes, H, W)

    partials = pl.pallas_call(
        _tv_partial_kernel,
        out_shape=jax.ShapeDtypeStruct((N, _SUBLANES, _LANES), jnp.float32),
        grid_spec=pltpu.PrefetchScalarGridSpec(
            num_scalar_prefetch=0,
            grid=(N,),
            in_specs=[
                pl.BlockSpec((1, C, H, W), lambda n: (n, 0, 0, 0)),
                pl.BlockSpec((1, Cm, H, W), lambda n: (n, 0, 0, 0)),
            ],
            out_specs=pl.BlockSpec((1, _SUBLANES, _LANES), lambda n: (n, 0, 0)),
        ),
        compiler_params=pltpu.CompilerParams(
            dimension_semantics=("parallel",),
            vmem_limit_bytes=vmem_limit),
    )(image, mask)

    sum_a = jnp.sum(partials[:, 0, 0])
    sum_b = jnp.sum(partials[:, 1, 0])
    return sum_a / count_a + sum_b / count_b


def total_variation_loss_ref(image, mask):
    """Pure-JAX reference mirroring the PyTorch code (for verification)."""
    _, Cm, _, _ = mask.shape
    w = jnp.ones((Cm, Cm, 3, 3), jnp.float32)    # torch.nn.init.constant_(1.0)
    out_mask = lax.conv_general_dilated(
        (1.0 - mask).astype(jnp.float32), w, window_strides=(1, 1),
        padding=((1, 1), (1, 1)),
        dimension_numbers=("NCHW", "OIHW", "NCHW"))
    holes = (out_mask != 0).astype(jnp.float32)
    P = holes * image.astype(jnp.float32)
    a = jnp.mean(jnp.abs(P[:, :, :, 1:] - P[:, :, :, :-1]))
    b = jnp.mean(jnp.abs(P[:, :, 1:, :] - P[:, :, :-1, :]))
    return a + b


if __name__ == "__main__":
    key = jax.random.PRNGKey(0)
    k_img, k_mask, k_mask1 = jax.random.split(key, 3)

    N, C, H, W = 2, 4, 16, 16
    image = jax.random.normal(k_img, (N, C, H, W), dtype=jnp.float32)
    # binary hole mask (1 = valid, 0 = hole), like typical inpainting masks
    mask = (jax.random.uniform(k_mask, (N, C, H, W)) > 0.3).astype(jnp.float32)

    # Test 1: f32 image, per-channel f32 mask (Cm == C).
    tv = total_variation_loss(image, mask)
    jax.block_until_ready(tv)
    tv_ref = total_variation_loss_ref(image, mask)
    assert jnp.allclose(tv, tv_ref, atol=1e-5, rtol=1e-5), (tv, tv_ref)

    # Test 2: bf16 image + channel-collapsed (Cm = 1) mask.  The kernel runs
    # the per-channel diffs in bf16 (looser tolerance: <= 2^-9 rel rounding).
    image_bf16 = image.astype(jnp.bfloat16)
    mask1 = (jax.random.uniform(k_mask1, (N, 1, H, W)) > 0.3).astype(
        jnp.float32)
    tv_bf16 = total_variation_loss(image_bf16, mask1)
    jax.block_until_ready(tv_bf16)
    tv_bf16_ref = total_variation_loss_ref(
        image_bf16.astype(jnp.float32), mask1)
    assert jnp.allclose(tv_bf16, tv_bf16_ref, atol=5e-3, rtol=5e-3), (
        tv_bf16, tv_bf16_ref)

    print("KERNEL_OK")
</pallas_src>

<mosaic_0001>
module attributes {stable_mosaic.version = 11 : i64} {
  func.func @_tv_partial_kernel(%arg0: i32, %arg1: memref<1x4x16x16xf32, #tpu.memory_space<vmem>>, %arg2: memref<1x4x16x16xf32, #tpu.memory_space<vmem>>, %arg3: memref<1x8x128xf32, #tpu.memory_space<vmem>>) attributes {dimension_semantics = [#tpu.dimension_semantics<parallel>], iteration_bounds = array<i64: 2>, scalar_prefetch = 0 : i64, scratch_operands = 0 : i64, tpu.core_type = #tpu.core_type<tc>, window_params = [{transform_indices = @transform_0, window_bounds = array<i64: 1, 4, 16, 16>}, {transform_indices = @transform_1, window_bounds = array<i64: 1, 4, 16, 16>}, {transform_indices = @transform_2, window_bounds = array<i64: 1, 8, 128>}]} {
    %c0 = arith.constant 0 : index
    %c0_0 = arith.constant 0 : index
    %c0_1 = arith.constant 0 : index
    %c0_2 = arith.constant 0 : index
    %0 = vector.load %arg2[%c0, %c0_0, %c0_1, %c0_2] : memref<1x4x16x16xf32, #tpu.memory_space<vmem>>, vector<1x4x16x16xf32>
    %1 = vector.shape_cast %0 : vector<1x4x16x16xf32> to vector<4x16x16xf32>
    %cst = arith.constant dense<0.000000e+00> : vector<16x16xf32>
    %2 = vector.multi_reduction <add>, %1, %cst [0] : vector<4x16x16xf32> to vector<16x16xf32>
    %cst_3 = arith.constant 4.000000e+00 : f32
    %3 = vector.broadcast %cst_3 : f32 to vector<16x16xf32>
    %4 = arith.subf %3, %2 : vector<16x16xf32>
    %5 = tpu.iota {dimensions = array<i32: 0>} : vector<16x16xi32>
    %6 = tpu.iota {dimensions = array<i32: 1>} : vector<16x16xi32>
    %c1_i32 = arith.constant 1 : i32
    %7 = vector.broadcast %c1_i32 : i32 to vector<16x16xi32>
    %8 = arith.cmpi sge, %6, %7 : vector<16x16xi32>
    %c1_i32_4 = arith.constant 1 : i32
    %9 = tpu.dynamic_rotate %4 by %c1_i32_4 dim 1 : vector<16x16xf32>, i32 -> vector<16x16xf32>
    %cst_5 = arith.constant 0.000000e+00 : f32
    %10 = vector.broadcast %cst_5 : f32 to vector<16x16xf32>
    %11 = arith.select %8, %9, %10 : vector<16x16xi1>, vector<16x16xf32>
    %c15_i32 = arith.constant 15 : i32
    %12 = vector.broadcast %c15_i32 : i32 to vector<16x16xi32>
    %13 = arith.cmpi slt, %6, %12 : vector<16x16xi32>
    %c15_i32_6 = arith.constant 15 : i32
    %14 = tpu.dynamic_rotate %4 by %c15_i32_6 dim 1 : vector<16x16xf32>, i32 -> vector<16x16xf32>
    %cst_7 = arith.constant 0.000000e+00 : f32
    %15 = vector.broadcast %cst_7 : f32 to vector<16x16xf32>
    %16 = arith.select %13, %14, %15 : vector<16x16xi1>, vector<16x16xf32>
    %17 = arith.addf %4, %11 : vector<16x16xf32>
    %18 = arith.addf %17, %16 : vector<16x16xf32>
    %c1_i32_8 = arith.constant 1 : i32
    %19 = vector.broadcast %c1_i32_8 : i32 to vector<16x16xi32>
    %20 = arith.cmpi sge, %5, %19 : vector<16x16xi32>
    %c1_i32_9 = arith.constant 1 : i32
    %21 = tpu.dynamic_rotate %18 by %c1_i32_9 dim 0 : vector<16x16xf32>, i32 -> vector<16x16xf32>
    %cst_10 = arith.constant 0.000000e+00 : f32
    %22 = vector.broadcast %cst_10 : f32 to vector<16x16xf32>
    %23 = arith.select %20, %21, %22 : vector<16x16xi1>, vector<16x16xf32>
    %c15_i32_11 = arith.constant 15 : i32
    %24 = vector.broadcast %c15_i32_11 : i32 to vector<16x16xi32>
    %25 = arith.cmpi slt, %5, %24 : vector<16x16xi32>
    %c15_i32_12 = arith.constant 15 : i32
    %26 = tpu.dynamic_rotate %18 by %c15_i32_12 dim 0 : vector<16x16xf32>, i32 -> vector<16x16xf32>
    %cst_13 = arith.constant 0.000000e+00 : f32
    %27 = vector.broadcast %cst_13 : f32 to vector<16x16xf32>
    %28 = arith.select %25, %26, %27 : vector<16x16xi1>, vector<16x16xf32>
    %29 = arith.addf %18, %23 : vector<16x16xf32>
    %30 = arith.addf %29, %28 : vector<16x16xf32>
    %cst_14 = arith.constant 0.000000e+00 : f32
    %31 = vector.broadcast %cst_14 : f32 to vector<16x16xf32>
    %32 = arith.cmpf one, %30, %31 : vector<16x16xf32>
    %cst_15 = arith.constant 0.000000e+00 : f32
    %33 = vector.broadcast %cst_15 : f32 to vector<16x16xf32>
    %cst_16 = arith.constant 0.000000e+00 : f32
    %34 = vector.broadcast %cst_16 : f32 to vector<16x16xf32>
    %c0_17 = arith.constant 0 : index
    %c0_18 = arith.constant 0 : index
    %c0_19 = arith.constant 0 : index
    %c0_20 = arith.constant 0 : index
    %35 = vector.load %arg1[%c0_17, %c0_18, %c0_19, %c0_20] : memref<1x4x16x16xf32, #tpu.memory_space<vmem>>, vector<1x1x16x16xf32>
    %36 = vector.shape_cast %35 : vector<1x1x16x16xf32> to vector<16x16xf32>
    %cst_21 = arith.constant 0.000000e+00 : f32
    %37 = vector.broadcast %cst_21 : f32 to vector<16x16xf32>
    %38 = arith.select %32, %36, %37 : vector<16x16xi1>, vector<16x16xf32>
    %c1_i32_22 = arith.constant 1 : i32
    %39 = tpu.dynamic_rotate %38 by %c1_i32_22 dim 1 : vector<16x16xf32>, i32 -> vector<16x16xf32>
    %40 = arith.subf %38, %39 : vector<16x16xf32>
    %41 = math.absf %40 : vector<16x16xf32>
    %42 = arith.addf %33, %41 : vector<16x16xf32>
    %c1_i32_23 = arith.constant 1 : i32
    %43 = tpu.dynamic_rotate %38 by %c1_i32_23 dim 0 : vector<16x16xf32>, i32 -> vector<16x16xf32>
    %44 = arith.subf %38, %43 : vector<16x16xf32>
    %45 = math.absf %44 : vector<16x16xf32>
    %46 = arith.addf %34, %45 : vector<16x16xf32>
    %c0_24 = arith.constant 0 : index
    %c1 = arith.constant 1 : index
    %c0_25 = arith.constant 0 : index
    %c0_26 = arith.constant 0 : index
    %47 = vector.load %arg1[%c0_24, %c1, %c0_25, %c0_26] : memref<1x4x16x16xf32, #tpu.memory_space<vmem>>, vector<1x1x16x16xf32>
    %48 = vector.shape_cast %47 : vector<1x1x16x16xf32> to vector<16x16xf32>
    %cst_27 = arith.constant 0.000000e+00 : f32
    %49 = vector.broadcast %cst_27 : f32 to vector<16x16xf32>
    %50 = arith.select %32, %48, %49 : vector<16x16xi1>, vector<16x16xf32>
    %c1_i32_28 = arith.constant 1 : i32
    %51 = tpu.dynamic_rotate %50 by %c1_i32_28 dim 1 : vector<16x16xf32>, i32 -> vector<16x16xf32>
    %52 = arith.subf %50, %51 : vector<16x16xf32>
    %53 = math.absf %52 : vector<16x16xf32>
    %54 = arith.addf %42, %53 : vector<16x16xf32>
    %c1_i32_29 = arith.constant 1 : i32
    %55 = tpu.dynamic_rotate %50 by %c1_i32_29 dim 0 : vector<16x16xf32>, i32 -> vector<16x16xf32>
    %56 = arith.subf %50, %55 : vector<16x16xf32>
    %57 = math.absf %56 : vector<16x16xf32>
    %58 = arith.addf %46, %57 : vector<16x16xf32>
    %c0_30 = arith.constant 0 : index
    %c2 = arith.constant 2 : index
    %c0_31 = arith.constant 0 : index
    %c0_32 = arith.constant 0 : index
    %59 = vector.load %arg1[%c0_30, %c2, %c0_31, %c0_32] : memref<1x4x16x16xf32, #tpu.memory_space<vmem>>, vector<1x1x16x16xf32>
    %60 = vector.shape_cast %59 : vector<1x1x16x16xf32> to vector<16x16xf32>
    %cst_33 = arith.constant 0.000000e+00 : f32
    %61 = vector.broadcast %cst_33 : f32 to vector<16x16xf32>
    %62 = arith.select %32, %60, %61 : vector<16x16xi1>, vector<16x16xf32>
    %c1_i32_34 = arith.constant 1 : i32
    %63 = tpu.dynamic_rotate %62 by %c1_i32_34 dim 1 : vector<16x16xf32>, i32 -> vector<16x16xf32>
    %64 = arith.subf %62, %63 : vector<16x16xf32>
    %65 = math.absf %64 : vector<16x16xf32>
    %66 = arith.addf %54, %65 : vector<16x16xf32>
    %c1_i32_35 = arith.constant 1 : i32
    %67 = tpu.dynamic_rotate %62 by %c1_i32_35 dim 0 : vector<16x16xf32>, i32 -> vector<16x16xf32>
    %68 = arith.subf %62, %67 : vector<16x16xf32>
    %69 = math.absf %68 : vector<16x16xf32>
    %70 = arith.addf %58, %69 : vector<16x16xf32>
    %c0_36 = arith.constant 0 : index
    %c3 = arith.constant 3 : index
    %c0_37 = arith.constant 0 : index
    %c0_38 = arith.constant 0 : index
    %71 = vector.load %arg1[%c0_36, %c3, %c0_37, %c0_38] : memref<1x4x16x16xf32, #tpu.memory_space<vmem>>, vector<1x1x16x16xf32>
    %72 = vector.shape_cast %71 : vector<1x1x16x16xf32> to vector<16x16xf32>
    %cst_39 = arith.constant 0.000000e+00 : f32
    %73 = vector.broadcast %cst_39 : f32 to vector<16x16xf32>
    %74 = arith.select %32, %72, %73 : vector<16x16xi1>, vector<16x16xf32>
    %c1_i32_40 = arith.constant 1 : i32
    %75 = tpu.dynamic_rotate %74 by %c1_i32_40 dim 1 : vector<16x16xf32>, i32 -> vector<16x16xf32>
    %76 = arith.subf %74, %75 : vector<16x16xf32>
    %77 = math.absf %76 : vector<16x16xf32>
    %78 = arith.addf %66, %77 : vector<16x16xf32>
    %c1_i32_41 = arith.constant 1 : i32
    %79 = tpu.dynamic_rotate %74 by %c1_i32_41 dim 0 : vector<16x16xf32>, i32 -> vector<16x16xf32>
    %80 = arith.subf %74, %79 : vector<16x16xf32>
    %81 = math.absf %80 : vector<16x16xf32>
    %82 = arith.addf %70, %81 : vector<16x16xf32>
    %c1_i32_42 = arith.constant 1 : i32
    %83 = vector.broadcast %c1_i32_42 : i32 to vector<16x16xi32>
    %84 = arith.cmpi sge, %6, %83 : vector<16x16xi32>
    %cst_43 = arith.constant 0.000000e+00 : f32
    %85 = vector.broadcast %cst_43 : f32 to vector<16x16xf32>
    %86 = arith.select %84, %78, %85 : vector<16x16xi1>, vector<16x16xf32>
    %87 = vector.shape_cast %86 : vector<16x16xf32> to vector<1x16x16xf32>
    %cst_44 = arith.constant dense<0.000000e+00> : vector<1xf32>
    %88 = vector.multi_reduction <add>, %87, %cst_44 [1, 2] : vector<1x16x16xf32> to vector<1xf32>
    %89 = vector.shape_cast %88 : vector<1xf32> to vector<1x1x1xf32>
    %90 = vector.extract %89[0, 0, 0] : f32 from vector<1x1x1xf32>
    %c1_i32_45 = arith.constant 1 : i32
    %91 = vector.broadcast %c1_i32_45 : i32 to vector<16x16xi32>
    %92 = arith.cmpi sge, %5, %91 : vector<16x16xi32>
    %cst_46 = arith.constant 0.000000e+00 : f32
    %93 = vector.broadcast %cst_46 : f32 to vector<16x16xf32>
    %94 = arith.select %92, %82, %93 : vector<16x16xi1>, vector<16x16xf32>
    %95 = vector.shape_cast %94 : vector<16x16xf32> to vector<1x16x16xf32>
    %cst_47 = arith.constant dense<0.000000e+00> : vector<1xf32>
    %96 = vector.multi_reduction <add>, %95, %cst_47 [1, 2] : vector<1x16x16xf32> to vector<1xf32>
    %97 = vector.shape_cast %96 : vector<1xf32> to vector<1x1x1xf32>
    %98 = vector.extract %97[0, 0, 0] : f32 from vector<1x1x1xf32>
    %99 = tpu.iota {dimensions = array<i32: 0>} : vector<8x128xi32>
    %c0_i32 = arith.constant 0 : i32
    %100 = vector.broadcast %c0_i32 : i32 to vector<8x128xi32>
    %101 = arith.cmpi eq, %99, %100 : vector<8x128xi32>
    %c1_i32_48 = arith.constant 1 : i32
    %102 = vector.broadcast %c1_i32_48 : i32 to vector<8x128xi32>
    %103 = arith.cmpi eq, %99, %102 : vector<8x128xi32>
    %cst_49 = arith.constant 0.000000e+00 : f32
    %104 = vector.broadcast %98 : f32 to vector<8x128xf32>
    %105 = vector.broadcast %cst_49 : f32 to vector<8x128xf32>
    %106 = arith.select %103, %104, %105 : vector<8x128xi1>, vector<8x128xf32>
    %107 = vector.broadcast %90 : f32 to vector<8x128xf32>
    %108 = arith.select %101, %107, %106 : vector<8x128xi1>, vector<8x128xf32>
    %109 = vector.shape_cast %108 : vector<8x128xf32> to vector<1x8x128xf32>
    %c0_50 = arith.constant 0 : index
    %c0_51 = arith.constant 0 : index
    %c0_52 = arith.constant 0 : index
    %110 = vector.load %arg3[%c0_50, %c0_51, %c0_52] : memref<1x8x128xf32, #tpu.memory_space<vmem>>, vector<1x8x128xf32>
    tpu.vector_store %arg3[%c0_50, %c0_51, %c0_52], %109 {strides = array<i32>} : memref<1x8x128xf32, #tpu.memory_space<vmem>>, vector<1x8x128xf32>,
    return
  }
  func.func @transform_0(%arg0: i32) -> (i32, i32, i32, i32) {
    %c0_i32 = arith.constant 0 : i32
    %c0_i32_0 = arith.constant 0 : i32
    %c0_i32_1 = arith.constant 0 : i32
    %c0_i32_2 = arith.constant 0 : i32
    return %arg0, %c0_i32, %c0_i32_0, %c0_i32_1 : i32, i32, i32, i32
  }
  func.func @transform_1(%arg0: i32) -> (i32, i32, i32, i32) {
    %c0_i32 = arith.constant 0 : i32
    %c0_i32_0 = arith.constant 0 : i32
    %c0_i32_1 = arith.constant 0 : i32
    %c0_i32_2 = arith.constant 0 : i32
    return %arg0, %c0_i32, %c0_i32_0, %c0_i32_1 : i32, i32, i32, i32
  }
  func.func @transform_2(%arg0: i32) -> (i32, i32, i32) {
    %c0_i32 = arith.constant 0 : i32
    %c0_i32_0 = arith.constant 0 : i32
    %c0_i32_1 = arith.constant 0 : i32
    return %arg0, %c0_i32, %c0_i32_0 : i32, i32, i32
  }
}

</mosaic_0001>

<llo_original>
// kernel: tpu_custom_call.1
$region0: #{tpu_custom_call.1}
  #allocation0 [shape = 'u32[]', space=smem, size = 0x4, offset = 0x4, fixed_abs, tag = 'smem constant byte address 0x4 - core index']
  #allocation1 [shape = 'u32[72,128]{1,0:T(1,128)}', space=vmem, size = 0x9000, scoped, tag = 'internal scratch']
  %s0 = inlined_call_operand.hbm [shape: f32[2,4,16,16], index: 0, kind: input, shape index: {}]
  %s1 = inlined_call_operand.hbm [shape: f32[2,4,16,16], index: 1, kind: input, shape index: {}]
  %s2 = inlined_call_operand.hbm [shape: f32[2,8,128], index: 2, kind: output, shape index: {}]
  %s3 = sld [smem:[#allocation0]]
  $region49: #{tpu_custom_call.1} parent=0
    _
  %s5 = ssub.s32 1, %s3
  %s6 = scalar_select 0, %s5, %s3
  $region1: #{tpu_custom_call.1} parent=0
    #allocation2 [shape = 'u8[65536]{0}', space=vmem, size = 0x10000, scoped, tag = 'input window, operand 0']
    #allocation3 [shape = 's32[2]{0}', space=sflag, size = 0x8, scoped, tag = 'scoped memory for tpu_custom_call.1']
    #allocation4 [shape = 's32[2]{0}', space=sflag, size = 0x8, scoped, tag = 'scoped memory for tpu_custom_call.1']
    #allocation5 [shape = 'u8[65536]{0}', space=vmem, size = 0x10000, scoped, tag = 'input window, operand 1']
    #allocation6 [shape = 's32[2]{0}', space=sflag, size = 0x8, scoped, tag = 'scoped memory for tpu_custom_call.1']
    #allocation7 [shape = 'u8[8192]{0}', space=vmem, size = 0x2000, scoped, tag = 'output window, operand 0']
    %7 = vsyncpa [#allocation3], 0
    %s8 = scalar_lea.sflag [#allocation3], 1
    %9 = vsyncpa %s8, 0
    %10 = vsyncpa [#allocation6], 0
    %s11 = scalar_lea.sflag [#allocation6], 1
    %12 = vsyncpa %s11, 0
    %13 = vsyncpa [#allocation4], 0
    %s14 = scalar_lea.sflag [#allocation4], 1
    %15 = vsyncpa %s14, 0
    loop: start=0, step=1, limit=4
    $region2: #{tpu_custom_call.1} parent=1 // loop_pre_header
      _
    $region3: #{tpu_custom_call.1} parent=1 // loop_header
      %s17 = sphi 0, %s21
      %p18 = scmp.ge.s32.totalorder %s17, 4
      %s27 = sphi 0, %s29
      %s30 = sphi 0, %s27
      %s31 = sphi 0, %s30
      %s47 = sphi 0, %s31
      %s53 = sphi 0, %s55
      %s56 = sphi 0, %s53
      %s57 = sphi 0, %s56
      %s73 = sphi 0, %s57
      %s79 = sphi 0, %s81
      %s82 = sphi 0, %s79
      %s83 = sphi 0, %s82
      %s99 = sphi 0, %s83
    $region4: #{tpu_custom_call.1} parent=1 // loop_header_branch
      %20 = sbr.rel (%p18) target = $region8
    $region5: #{tpu_custom_call.1} parent=1 // loop_body
      %s22 = ssub.s32 %s17, 1
      %s23 = ssub.s32 %s17, 2
      %s24 = sadd.s32 %s17, 1
      %s25 = ssub.s32 %s17, %s24
      %p26 = scmp.eq.s32.totalorder %s25, 0
      %s28 = sadd.s32 %s27, 1
      %s29 = scalar_select %p26, %s27, %s28
      %p32 = pneg %p26
      %p33 = scmp.eq.s32.totalorder %s17, 1
      %p34 = por %p32, %p33
      %p35 = scmp.ne.s32.totalorder %s27, %s30
      %p36 = scmp.eq.s32.totalorder %s17, 0
      %p37 = por %p35, %p36
      %p38 = scmp.ne.s32.totalorder %s27, %s30
      %p39 = scmp.eq.s32.totalorder %s22, 1
      %p40 = por %p38, %p39
      %p41 = scmp.ne.s32.totalorder %s30, %s31
      %p42 = scmp.eq.s32.totalorder %s22, 0
      %p43 = por %p41, %p42
      %p44 = scmp.ne.s32.totalorder %s30, %s31
      %p45 = scmp.eq.s32.totalorder %s23, 1
      %p46 = por %p44, %p45
      %p48 = scmp.ne.s32.totalorder %s31, %s47
      %p49 = scmp.eq.s32.totalorder %s23, 0
      %p50 = por %p48, %p49
      %s51 = ssub.s32 %s17, %s24
      %p52 = scmp.eq.s32.totalorder %s51, 0
      %s54 = sadd.s32 %s53, 1
      %s55 = scalar_select %p52, %s53, %s54
      %p58 = pneg %p52
      %p59 = scmp.eq.s32.totalorder %s17, 1
      %p60 = por %p58, %p59
      %p61 = scmp.ne.s32.totalorder %s53, %s56
      %p62 = scmp.eq.s32.totalorder %s17, 0
      %p63 = por %p61, %p62
      %p64 = scmp.ne.s32.totalorder %s53, %s56
      %p65 = scmp.eq.s32.totalorder %s22, 1
      %p66 = por %p64, %p65
      %p67 = scmp.ne.s32.totalorder %s56, %s57
      %p68 = scmp.eq.s32.totalorder %s22, 0
      %p69 = por %p67, %p68
      %p70 = scmp.ne.s32.totalorder %s56, %s57
      %p71 = scmp.eq.s32.totalorder %s23, 1
      %p72 = por %p70, %p71
      %p74 = scmp.ne.s32.totalorder %s57, %s73
      %p75 = scmp.eq.s32.totalorder %s23, 0
      %p76 = por %p74, %p75
      %s77 = ssub.s32 %s17, %s24
      %p78 = scmp.eq.s32.totalorder %s77, 0
      %s80 = sadd.s32 %s79, 1
      %s81 = scalar_select %p78, %s79, %s80
      %p84 = pneg %p78
      %p85 = scmp.eq.s32.totalorder %s17, 1
      %p86 = por %p84, %p85
      %p87 = scmp.ne.s32.totalorder %s79, %s82
      %p88 = scmp.eq.s32.totalorder %s17, 0
      %p89 = por %p87, %p88
      %p90 = scmp.ne.s32.totalorder %s79, %s82
      %p91 = scmp.eq.s32.totalorder %s22, 1
      %p92 = por %p90, %p91
      %p93 = scmp.ne.s32.totalorder %s82, %s83
      %p94 = scmp.eq.s32.totalorder %s22, 0
      %p95 = por %p93, %p94
      %p96 = scmp.ne.s32.totalorder %s82, %s83
      %p97 = scmp.eq.s32.totalorder %s23, 1
      %p98 = por %p96, %p97
      %p100 = scmp.ne.s32.totalorder %s83, %s99
      %p101 = scmp.eq.s32.totalorder %s23, 0
      %p102 = por %p100, %p101
      %p103 = scmp.le.s32.totalorder 1, %s17
      %p104 = scmp.lt.s32.totalorder %s17, 3
      %p105 = pnand %p103, %p104
      %p106 = pneg %p105
      // Predicated region
      $region9: #{tpu_custom_call.1} parent=5 // pred_check
        _
      $region10: #{tpu_custom_call.1} parent=5 // pred_check_branch
        %108 = sbr.rel (%p105) target = $region12
      $region11: #{tpu_custom_call.1} parent=5 // pred_region
        %s109 = ssub.s32 %s17, 1
      $region12: #{tpu_custom_call.1} parent=5 // pred_fallthru
        _
      %p110 = scmp.lt.s32.totalorder %s17, 2
      // Predicated region
      $region13: #{tpu_custom_call.1} parent=5 // pred_check
        %p111 = pneg %p110
      $region14: #{tpu_custom_call.1} parent=5 // pred_check_branch
        %113 = sbr.rel (%p111) target = $region16
      $region15: #{tpu_custom_call.1} parent=5 // pred_region
        // Predicated region
        $region17: #{tpu_custom_call.1} parent=15 // pred_check
          %p114 = pneg %p37
        $region18: #{tpu_custom_call.1} parent=15 // pred_check_branch
          %116 = sbr.rel (%p114) target = $region20
        $region19: #{tpu_custom_call.1} parent=15 // pred_region
          %s117 = sand.u32 %s27, 1
          %s118 = scalar_lea.sflag [#allocation3], %s117
          %s119 = sand.u32 %s27, 1
          %s120 = smul.addr %s119, 64
          %s121 = scalar_lea.vmem [#allocation2], %s120
          %123 = vsyncadd %s118, 0
          %s124 = smul.addr %s17, 8
          %s125 = smul.addr %s124, 8
          %s126 = scalar_lea.hbm %s0, %s125
          %s127 = sshll.u32 %s126, 4
          %s128 = int_to_ptr.hbm [resolvable:$true] %s127
          %s129 = sshll.u32 %s121, 4
          %s130 = int_to_ptr.vmem [resolvable:$true] %s129
          %135 = dma.hbm_to_vmem [thread:$0]  %s128, 1024, %s130, %s118, 128, 128, 8
        $region20: #{tpu_custom_call.1} parent=15 // pred_fallthru
          _
        // Predicated region
        $region21: #{tpu_custom_call.1} parent=15 // pred_check
          %p136 = pneg %p63
        $region22: #{tpu_custom_call.1} parent=15 // pred_check_branch
          %138 = sbr.rel (%p136) target = $region24
        $region23: #{tpu_custom_call.1} parent=15 // pred_region
          %s139 = sand.u32 %s53, 1
          %s140 = scalar_lea.sflag [#allocation6], %s139
          %s141 = sand.u32 %s53, 1
          %s142 = smul.addr %s141, 64
          %s143 = scalar_lea.vmem [#allocation5], %s142
          %145 = vsyncadd %s140, 0
          %s146 = smul.addr %s17, 8
          %s147 = smul.addr %s146, 8
          %s148 = scalar_lea.hbm %s1, %s147
          %s149 = sshll.u32 %s148, 4
          %s150 = int_to_ptr.hbm [resolvable:$true] %s149
          %s151 = sshll.u32 %s143, 4
          %s152 = int_to_ptr.vmem [resolvable:$true] %s151
          %157 = dma.hbm_to_vmem [thread:$0]  %s150, 1024, %s152, %s140, 128, 128, 8
        $region24: #{tpu_custom_call.1} parent=15 // pred_fallthru
          _
      $region16: #{tpu_custom_call.1} parent=5 // pred_fallthru
        _
      %p158 = scmp.le.s32.totalorder 1, %s17
      %p159 = scmp.lt.s32.totalorder %s17, 3
      %p160 = pnand %p158, %p159
      %p161 = pneg %p160
      // Predicated region
      $region25: #{tpu_custom_call.1} parent=5 // pred_check
        _
      $region26: #{tpu_custom_call.1} parent=5 // pred_check_branch
        %163 = sbr.rel (%p160) target = $region28
      $region27: #{tpu_custom_call.1} parent=5 // pred_region
        %s164 = ssub.s32 %s17, 1
        %s165 = sand.u32 %s30, 1
        %s166 = scalar_lea.sflag [#allocation3], %s165
        %s167 = sand.u32 %s30, 1
        %s168 = smul.addr %s167, 64
        %s169 = scalar_lea.vmem [#allocation2], %s168
        // Predicated region
        $region29: #{tpu_custom_call.1} parent=27 // pred_check
          %p170 = pneg %p43
        $region30: #{tpu_custom_call.1} parent=27 // pred_check_branch
          %172 = sbr.rel (%p170) target = $region32
        $region31: #{tpu_custom_call.1} parent=27 // pred_region
          %174 = dma.done %s166, 1024
        $region32: #{tpu_custom_call.1} parent=27 // pred_fallthru
          _
        %s175 = sand.u32 %s56, 1
        %s176 = scalar_lea.sflag [#allocation6], %s175
        %s177 = sand.u32 %s56, 1
        %s178 = smul.addr %s177, 64
        %s179 = scalar_lea.vmem [#allocation5], %s178
        // Predicated region
        $region33: #{tpu_custom_call.1} parent=27 // pred_check
          %p180 = pneg %p69
        $region34: #{tpu_custom_call.1} parent=27 // pred_check_branch
          %182 = sbr.rel (%p180) target = $region36
        $region35: #{tpu_custom_call.1} parent=27 // pred_region
          %184 = dma.done %s176, 1024
        $region36: #{tpu_custom_call.1} parent=27 // pred_fallthru
          _
        %s185 = sand.u32 %s30, 1
        %s186 = scalar_lea.sflag [#allocation3], %s185
        %s187 = sand.u32 %s30, 1
        %s188 = smul.addr %s187, 64
        %s189 = scalar_lea.vmem [#allocation2], %s188
        %p190 = pneg %p43
        %p191 = pneg %p40
        %s192 = sand.u32 %s56, 1
        %s193 = scalar_lea.sflag [#allocation6], %s192
        %s194 = sand.u32 %s56, 1
        %s195 = smul.addr %s194, 64
        %s196 = scalar_lea.vmem [#allocation5], %s195
        %p197 = pneg %p69
        %p198 = pneg %p66
        %p199 = pneg %p95
        %p200 = pneg %p92
        %s201 = sand.u32 %s82, 1
        %s202 = scalar_lea.sflag [#allocation4], %s201
        %s203 = sand.u32 %s82, 1
        %s204 = smul.addr %s203, 8
        %s205 = scalar_lea.vmem [#allocation7], %s204
        %v206 = vld [vmem:[%s179] sm:$0xff]
        %v207 = vld [vmem:[%s179 + $0x8] sm:$0xff]
        %v208 = vld [vmem:[%s179 + $0x10] sm:$0xff]
        %v209 = vld [vmem:[%s179 + $0x18] sm:$0xff]
        %v210 = vld [vmem:[%s179 + $0x20] sm:$0xff]
        %v211 = vld [vmem:[%s179 + $0x28] sm:$0xff]
        %v212 = vld [vmem:[%s179 + $0x30] sm:$0xff]
        %v213 = vld [vmem:[%s179 + $0x38] sm:$0xff]
        %vm214 = vcmask 130048
        %v215 = vsel %vm214, %v206, 0.0
        %v216 = vsel %vm214, %v208, 0.0
        %v217 = vadd.f32 %v215, %v216
        %v218 = vsel %vm214, %v210, 0.0
        %v219 = vadd.f32 %v217, %v218
        %v220 = vsel %vm214, %v212, 0.0
        %v221 = vadd.f32 %v219, %v220
        %v222 = vsel %vm214, %v207, 0.0
        %v223 = vsel %vm214, %v209, 0.0
        %v224 = vadd.f32 %v222, %v223
        %v225 = vsel %vm214, %v211, 0.0
        %v226 = vadd.f32 %v224, %v225
        %v227 = vsel %vm214, %v213, 0.0
        %v228 = vadd.f32 %v226, %v227
        %v229 = vsub.f32 4.0, %v221
        %v230 = vsub.f32 4.0, %v228
        %v231 = vlaneseq
        %v232 = vshrl.u32 %v231, 7
        %v233 = vadd.s32 %v232, 8
        %v234 = vlaneseq
        %v235 = vand.u32 %v234, 127
        %vm236 = vcmp.ge.s32.totalorder %v235, 1
        %vm237 = vcmask 1047680
        %238 = vrot.lane.b32.xlu0 %v229, 16
        %v239 = vpop.permute.xlu0 %238
        %v240 = vsel %vm237, %v239, %v229
        %241 = vrot.lane.b32.xlu0 %v230, 16
        %v242 = vpop.permute.xlu0 %241
        %v243 = vsel %vm237, %v242, %v230
        %244 = vrot.lane.b32.xlu0 %v240, 16
        %v245 = vpop.permute.xlu0 %244
        %246 = vrot.lane.b32.xlu0 %v243, 16
        %v247 = vpop.permute.xlu0 %246
        %v248 = vsel %vm237, %v245, %v229
        %v249 = vsel %vm237, %v247, %v230
        %252 = vrot.lane.b32.xlu0 %v248, 113
        %v253 = vpop.permute.xlu0 %252
        %254 = vrot.lane.b32.xlu0 %v249, 113
        %v255 = vpop.permute.xlu0 %254
        %v258 = vsel %vm236, %v253, 0.0
        %v259 = vsel %vm236, %v255, 0.0
        %vm260 = vcmp.lt.s32.totalorder %v235, 15
        %261 = vrot.lane.b32.xlu0 %v248, 127
        %v262 = vpop.permute.xlu0 %261
        %263 = vrot.lane.b32.xlu0 %v249, 127
        %v264 = vpop.permute.xlu0 %263
        %v267 = vsel %vm260, %v262, 0.0
        %v268 = vsel %vm260, %v264, 0.0
        %v269 = vadd.f32 %v229, %v258
        %v270 = vadd.f32 %v230, %v259
        %v271 = vadd.f32 %v269, %v267
        %v272 = vadd.f32 %v270, %v268
        %vm273 = vcmp.ge.s32.totalorder %v232, 1
        %vm274 = vcmp.ge.s32.totalorder %v233, 1
        %v275 = vrot.slane %v271, 7
        %v276 = vrot.slane %v272, 7
        %vm277 = vcmp.lt.s32.totalorder %v232, 1
        %v278 = vsel %vm277, %v275, %v276
        %v279 = vsel %vm277, %v276, %v275
        %v280 = vsel %vm273, %v279, 0.0
        %v281 = vsel %vm274, %v278, 0.0
        %vm282 = vcmp.lt.s32.totalorder %v232, 15
        %vm283 = vcmp.lt.s32.totalorder %v233, 15
        %v284 = vrot.slane %v271, 1
        %v285 = vrot.slane %v272, 1
        %vm286 = vcmp.lt.s32.totalorder %v232, 7
        %v287 = vsel %vm286, %v284, %v285
        %v288 = vsel %vm286, %v285, %v284
        %v289 = vsel %vm282, %v287, 0.0
        %v290 = vsel %vm283, %v288, 0.0
        %v291 = vadd.f32 %v271, %v280
        %v292 = vadd.f32 %v272, %v281
        %v293 = vadd.f32 %v291, %v289
        %v294 = vadd.f32 %v292, %v290
        %vm295 = vcmp.ne.f32.partialorder %v293, 0.0
        %vm296 = vcmp.ne.f32.partialorder %v294, 0.0
        %v297 = vld [vmem:[%s169] sm:$0xff]
        %v298 = vld [vmem:[%s169 + $0x8] sm:$0xff]
        %v299 = vsel %vm295, %v297, 0.0
        %v300 = vsel %vm296, %v298, 0.0
        %301 = vrot.lane.b32.xlu0 %v299, 16
        %v302 = vpop.permute.xlu0 %301
        %v303 = vsel %vm237, %v302, %v299
        %304 = vrot.lane.b32.xlu0 %v300, 16
        %v305 = vpop.permute.xlu0 %304
        %v306 = vsel %vm237, %v305, %v300
        %307 = vrot.lane.b32.xlu0 %v303, 16
        %v308 = vpop.permute.xlu0 %307
        %309 = vrot.lane.b32.xlu0 %v306, 16
        %v310 = vpop.permute.xlu0 %309
        %v311 = vsel %vm237, %v308, %v299
        %v312 = vsel %vm237, %v310, %v300
        %315 = vrot.lane.b32.xlu0 %v311, 113
        %v316 = vpop.permute.xlu0 %315
        %317 = vrot.lane.b32.xlu0 %v312, 113
        %v318 = vpop.permute.xlu0 %317
        %v321 = vsub.f32 %v299, %v316
        %v322 = vsub.f32 %v300, %v318
        %v323 = vand.u32 2147483647, %v321
        %v324 = vand.u32 2147483647, %v322
        %v325 = vadd.f32 %v323, 0.0
        %v326 = vadd.f32 %v324, 0.0
        %v327 = vrot.slane %v299, 7
        %v328 = vrot.slane %v300, 7
        %v329 = vsel %vm277, %v327, %v328
        %v330 = vsel %vm277, %v328, %v327
        %v331 = vsub.f32 %v299, %v330
        %v332 = vsub.f32 %v300, %v329
        %v333 = vand.u32 2147483647, %v331
        %v334 = vand.u32 2147483647, %v332
        %v335 = vadd.f32 %v333, 0.0
        %v336 = vadd.f32 %v334, 0.0
        %s337 = scalar_lea.vmem %s169, 16 [#allocation2]
        %v338 = vld [vmem:[%s337] sm:$0xff]
        %v339 = vld [vmem:[%s337 + $0x8] sm:$0xff]
        %v340 = vsel %vm295, %v338, 0.0
        %v341 = vsel %vm296, %v339, 0.0
        %342 = vrot.lane.b32.xlu0 %v340, 16
        %v343 = vpop.permute.xlu0 %342
        %v344 = vsel %vm237, %v343, %v340
        %345 = vrot.lane.b32.xlu0 %v341, 16
        %v346 = vpop.permute.xlu0 %345
        %v347 = vsel %vm237, %v346, %v341
        %348 = vrot.lane.b32.xlu0 %v344, 16
        %v349 = vpop.permute.xlu0 %348
        %350 = vrot.lane.b32.xlu0 %v347, 16
        %v351 = vpop.permute.xlu0 %350
        %v352 = vsel %vm237, %v349, %v340
        %v353 = vsel %vm237, %v351, %v341
        %356 = vrot.lane.b32.xlu0 %v352, 113
        %v357 = vpop.permute.xlu0 %356
        %358 = vrot.lane.b32.xlu0 %v353, 113
        %v359 = vpop.permute.xlu0 %358
        %v362 = vsub.f32 %v340, %v357
        %v363 = vsub.f32 %v341, %v359
        %v364 = vand.u32 2147483647, %v362
        %v365 = vand.u32 2147483647, %v363
        %v366 = vadd.f32 %v325, %v364
        %v367 = vadd.f32 %v326, %v365
        %v368 = vrot.slane %v340, 7
        %v369 = vrot.slane %v341, 7
        %v370 = vsel %vm277, %v368, %v369
        %v371 = vsel %vm277, %v369, %v368
        %v372 = vsub.f32 %v340, %v371
        %v373 = vsub.f32 %v341, %v370
        %v374 = vand.u32 2147483647, %v372
        %v375 = vand.u32 2147483647, %v373
        %v376 = vadd.f32 %v335, %v374
        %v377 = vadd.f32 %v336, %v375
        %s378 = scalar_lea.vmem %s169, 32 [#allocation2]
        %v379 = vld [vmem:[%s378] sm:$0xff]
        %v380 = vld [vmem:[%s378 + $0x8] sm:$0xff]
        %v381 = vsel %vm295, %v379, 0.0
        %v382 = vsel %vm296, %v380, 0.0
        %383 = vrot.lane.b32.xlu0 %v381, 16
        %v384 = vpop.permute.xlu0 %383
        %v385 = vsel %vm237, %v384, %v381
        %386 = vrot.lane.b32.xlu0 %v382, 16
        %v387 = vpop.permute.xlu0 %386
        %v388 = vsel %vm237, %v387, %v382
        %389 = vrot.lane.b32.xlu0 %v385, 16
        %v390 = vpop.permute.xlu0 %389
        %391 = vrot.lane.b32.xlu0 %v388, 16
        %v392 = vpop.permute.xlu0 %391
        %v393 = vsel %vm237, %v390, %v381
        %v394 = vsel %vm237, %v392, %v382
        %397 = vrot.lane.b32.xlu0 %v393, 113
        %v398 = vpop.permute.xlu0 %397
        %399 = vrot.lane.b32.xlu0 %v394, 113
        %v400 = vpop.permute.xlu0 %399
        %v403 = vsub.f32 %v381, %v398
        %v404 = vsub.f32 %v382, %v400
        %v405 = vand.u32 2147483647, %v403
        %v406 = vand.u32 2147483647, %v404
        %v407 = vadd.f32 %v366, %v405
        %v408 = vadd.f32 %v367, %v406
        %v409 = vrot.slane %v381, 7
        %v410 = vrot.slane %v382, 7
        %v411 = vsel %vm277, %v409, %v410
        %v412 = vsel %vm277, %v410, %v409
        %v413 = vsub.f32 %v381, %v412
        %v414 = vsub.f32 %v382, %v411
        %v415 = vand.u32 2147483647, %v413
        %v416 = vand.u32 2147483647, %v414
        %v417 = vadd.f32 %v376, %v415
        %v418 = vadd.f32 %v377, %v416
        %s419 = scalar_lea.vmem %s169, 48 [#allocation2]
        %v420 = vld [vmem:[%s419] sm:$0xff]
        %v421 = vld [vmem:[%s419 + $0x8] sm:$0xff]
        %v422 = vsel %vm295, %v420, 0.0
        %v423 = vsel %vm296, %v421, 0.0
        %424 = vrot.lane.b32.xlu0 %v422, 16
        %v425 = vpop.permute.xlu0 %424
        %v426 = vsel %vm237, %v425, %v422
        %427 = vrot.lane.b32.xlu0 %v423, 16
        %v428 = vpop.permute.xlu0 %427
        %v429 = vsel %vm237, %v428, %v423
        %430 = vrot.lane.b32.xlu0 %v426, 16
        %v431 = vpop.permute.xlu0 %430
        %432 = vrot.lane.b32.xlu0 %v429, 16
        %v433 = vpop.permute.xlu0 %432
        %v434 = vsel %vm237, %v431, %v422
        %v435 = vsel %vm237, %v433, %v423
        %438 = vrot.lane.b32.xlu0 %v434, 113
        %v439 = vpop.permute.xlu0 %438
        %440 = vrot.lane.b32.xlu0 %v435, 113
        %v441 = vpop.permute.xlu0 %440
        %v444 = vsub.f32 %v422, %v439
        %v445 = vsub.f32 %v423, %v441
        %v446 = vand.u32 2147483647, %v444
        %v447 = vand.u32 2147483647, %v445
        %v448 = vadd.f32 %v407, %v446
        %v449 = vadd.f32 %v408, %v447
        %v450 = vrot.slane %v422, 7
        %v451 = vrot.slane %v423, 7
        %v452 = vsel %vm277, %v450, %v451
        %v453 = vsel %vm277, %v451, %v450
        %v454 = vsub.f32 %v422, %v453
        %v455 = vsub.f32 %v423, %v452
        %v456 = vand.u32 2147483647, %v454
        %v457 = vand.u32 2147483647, %v455
        %v458 = vadd.f32 %v417, %v456
        %v459 = vadd.f32 %v418, %v457
        %v460 = vsel %vm236, %v448, 0.0
        %v461 = vsel %vm236, %v449, 0.0
        %v462 = vsel %vm214, %v460, 0.0
        %v463 = vsel %vm214, %v461, 0.0
        %v464 = vadd.f32 %v462, %v463
        %465 = vadd.xlane.f32.xlu0 %v464
        %v466 = vpop.xlane.xlu0 %465
        %v467 = vrot.slane %v466, 4
        %v468 = vadd.f32 %v466, %v467
        %v469 = vrot.slane %v468, 2
        %v470 = vadd.f32 %v468, %v469
        %v471 = vrot.slane %v470, 1
        %v472 = vadd.f32 %v470, %v471
        %s473 = vtos %v472
        %v474 = vsel %vm273, %v458, 0.0
        %v475 = vsel %vm274, %v459, 0.0
        %v476 = vsel %vm214, %v474, 0.0
        %v477 = vsel %vm214, %v475, 0.0
        %v478 = vadd.f32 %v476, %v477
        %479 = vadd.xlane.f32.xlu0 %v478
        %v480 = vpop.xlane.xlu0 %479
        %v481 = vrot.slane %v480, 4
        %v482 = vadd.f32 %v480, %v481
        %v483 = vrot.slane %v482, 2
        %v484 = vadd.f32 %v482, %v483
        %v485 = vrot.slane %v484, 1
        %v486 = vadd.f32 %v484, %v485
        %s487 = vtos %v486
        %vm488 = vcmp.eq.s32.totalorder %v232, 0
        %vm489 = vcmp.eq.s32.totalorder %v232, 1
        %v490 = vstv %s487
        %v491 = vsel %vm489, %v490, 0.0
        %v492 = vstv %s473
        %v493 = vsel %vm488, %v492, %v491
        %494 = vst [vmem:[%s205] sm:$0xff] %v493
        %s495 = sand.u32 %s82, 1
        %s496 = scalar_lea.sflag [#allocation4], %s495
        %s497 = sand.u32 %s82, 1
        %s498 = smul.addr %s497, 8
        %s499 = scalar_lea.vmem [#allocation7], %s498
        // Predicated region
        $region37: #{tpu_custom_call.1} parent=27 // pred_check
          %p500 = pneg %p92
        $region38: #{tpu_custom_call.1} parent=27 // pred_check_branch
          %502 = sbr.rel (%p500) target = $region40
        $region39: #{tpu_custom_call.1} parent=27 // pred_region
          %504 = vsyncadd %s496, 0
          %s505 = smul.addr %s22, 8
          %s506 = scalar_lea.hbm %s2, %s505
          %s508 = sshll.u32 %s499, 4
          %s509 = int_to_ptr.vmem [resolvable:$true] %s508
          %s510 = sshll.u32 %s506, 4
          %s511 = int_to_ptr.hbm [resolvable:$true] %s510
          %513 = dma.vmem_to_hbm [thread:$0]  %s509, 128, %s511, %s496
        $region40: #{tpu_custom_call.1} parent=27 // pred_fallthru
          _
      $region28: #{tpu_custom_call.1} parent=5 // pred_fallthru
        _
      %p514 = scmp.le.s32.totalorder 2, %s17
      // Predicated region
      $region41: #{tpu_custom_call.1} parent=5 // pred_check
        %p515 = pneg %p514
      $region42: #{tpu_custom_call.1} parent=5 // pred_check_branch
        %517 = sbr.rel (%p515) target = $region44
      $region43: #{tpu_custom_call.1} parent=5 // pred_region
        %s518 = ssub.s32 %s17, 2
        // Predicated region
        $region45: #{tpu_custom_call.1} parent=43 // pred_check
          %p519 = pneg %p98
        $region46: #{tpu_custom_call.1} parent=43 // pred_check_branch
          %521 = sbr.rel (%p519) target = $region48
        $region47: #{tpu_custom_call.1} parent=43 // pred_region
          %s522 = sand.u32 %s83, 1
          %s523 = scalar_lea.sflag [#allocation4], %s522
          %s524 = sand.u32 %s83, 1
          %s525 = smul.addr %s524, 8
          %s526 = scalar_lea.vmem [#allocation7], %s525
          %528 = dma.done %s523, 128
        $region48: #{tpu_custom_call.1} parent=43 // pred_fallthru
          _
      $region44: #{tpu_custom_call.1} parent=5 // pred_fallthru
        _
    $region6: #{tpu_custom_call.1} parent=1 // loop_footer
      %s21 = sadd.s32 1, %s17
    $region7: #{tpu_custom_call.1} parent=1 // loop_footer_branch
      %16 = sbr.rel target = $region3
    $region8: #{tpu_custom_call.1} parent=1 // loop_exit
      _
    %529 = vsyncpa [#allocation3], 1
    %s530 = scalar_lea.sflag [#allocation3], 1
    %531 = vsyncpa %s530, 1
    %532 = vsyncpa [#allocation6], 1
    %s533 = scalar_lea.sflag [#allocation6], 1
    %534 = vsyncpa %s533, 1
    %535 = vsyncpa [#allocation4], 1
    %s536 = scalar_lea.sflag [#allocation4], 1
    %537 = vsyncpa %s536, 1

</llo_original>
